<compile_context>
chip_gen: v5e
topology: v5e:2x2
jax: 0.10.0
libtpu: 0.0.40
codegen_flags: <defaults>
</compile_context>

<pallas_src>
import functools

import jax
import jax.numpy as jnp
from jax import lax
from jax.experimental import pallas as pl
from jax.experimental.pallas import tpu as pltpu

HIDDEN = 128
LANE = 128
SUBLANE = 8
DEFAULT_BATCH_TILE = 1024   # ~1 MiB of f32 intermediates per step: trivial vs VMEM on all gens
SINGLE_TILE_MAX = 256       # below this, one full-extent tile (pad <= 7 rows, no 128-multiple rule)


def _round_up(n, m):
    return ((n + m - 1) // m) * m


def _choose_batch_tiling(batch):
    """Returns (tile_rows, padded_batch, num_tiles)."""
    b8 = _round_up(batch, SUBLANE)
    if b8 <= SINGLE_TILE_MAX:
        # Single tile covering the whole (sublane-padded) batch: block == full array
        # extent, so the last-dim-of-128 rule doesn't apply and padding is <= 7 rows.
        return b8, b8, 1
    # >= 2 tiles so v7x can shard the batch axis across both TensorCores; tiles are
    # 128-row multiples so the transposed output store stays lane-dense, and the tile
    # is derived from ceil(B / n_tiles) so padding waste stays bounded.
    n = max(2, pl.cdiv(b8, DEFAULT_BATCH_TILE))
    tb = _round_up(pl.cdiv(b8, n), LANE)
    n = max(2, pl.cdiv(b8, tb))   # drop tail tiles emptied by the 128-round-up
    return tb, tb * n, n


def _dqn_kernel(x_ref, w1_ref, b1_ref, w2_ref, b2_ref, w3t_ref, b3t_ref, out_ref):
    # fc1 + relu: bf16 MXU operands, f32 accumulate, f32 elementwise (v5e-safe).
    x = x_ref[...].astype(jnp.bfloat16)            # no-op if x is already bf16
    h1 = jnp.dot(x, w1_ref[...], preferred_element_type=jnp.float32)
    h1 = jnp.maximum(h1 + b1_ref[...], 0.0).astype(jnp.bfloat16)
    # fc2 + relu
    h2 = jnp.dot(h1, w2_ref[...], preferred_element_type=jnp.float32)
    h2 = jnp.maximum(h2 + b2_ref[...], 0.0).astype(jnp.bfloat16)
    # fc3, emitted transposed: (out_pad8, TB) = W3 @ h2^T. Batch is the lane dim of
    # the store -> full-lane vst; only real (sublane-padded) action rows are written.
    y_t = lax.dot_general(w3t_ref[...], h2, (((1,), (1,)), ((), ())),
                          preferred_element_type=jnp.float32)
    out_ref[...] = y_t + b3t_ref[...]


@functools.partial(jax.jit, static_argnames=("out_dim",))
def dqn_forward(x, w1, b1, w2, b2, w3t, b3t, *, out_dim):
    """DQN forward. x: [B, input_dim] (f32 or bf16). Returns [B, out_dim] f32."""
    batch, feat = x.shape
    d_in_pad = w1.shape[0]
    out_pad8 = w3t.shape[0]
    if feat > d_in_pad:
        raise ValueError(
            f"x has {feat} features but the weights were built for <= {d_in_pad}")

    # Pad features to the stored (sublane-aligned) width; skipped when already aligned.
    if feat != d_in_pad:
        x = jnp.pad(x, ((0, 0), (0, d_in_pad - feat)))

    tb, b_pad, n_tiles = _choose_batch_tiling(batch)
    if b_pad != batch:
        x = jnp.pad(x, ((0, b_pad - batch), (0, 0)))

    resident = lambda i: (0, 0)   # same block every grid step -> stays VMEM-resident

    out_t = pl.pallas_call(
        _dqn_kernel,
        out_shape=jax.ShapeDtypeStruct((out_pad8, b_pad), jnp.float32),
        grid=(n_tiles,),
        in_specs=[
            pl.BlockSpec((tb, d_in_pad), lambda i: (i, 0)),   # x: streamed / double-buffered
            pl.BlockSpec((d_in_pad, HIDDEN), resident),       # w1
            pl.BlockSpec((1, HIDDEN), resident),              # b1
            pl.BlockSpec((HIDDEN, HIDDEN), resident),         # w2
            pl.BlockSpec((1, HIDDEN), resident),              # b2
            pl.BlockSpec((out_pad8, HIDDEN), resident),       # w3 (PyTorch (out, in) layout)
            pl.BlockSpec((out_pad8, 1), resident),            # b3 (column vector)
        ],
        out_specs=pl.BlockSpec((out_pad8, tb), lambda i: (0, i)),
        compiler_params=pltpu.CompilerParams(
            dimension_semantics=("parallel",),   # v7x: shard batch tiles across both TCs
        ),
    )(x, w1, b1, w2, b2, w3t, b3t)

    # Tiny (out_dim, B) slab -> back to the module's [B, out_dim] layout. For a pure
    # action-selection path, argmax over axis 0 of out_t[:out_dim, :batch] avoids
    # even this transpose.
    return out_t[:out_dim, :batch].T


def init_dqn_params(key, input_dim, output_dim):
    """PyTorch-style uniform(+/- 1/sqrt(fan_in)) init, laid out for the kernel.

    Returns (w1, b1, w2, b2, w3t, b3t):
      * w1:  [round_up(input_dim, 8), 128] bf16  (x @ W layout; padded rows are zero)
      * b1, b2: [1, 128] f32
      * w2:  [128, 128] bf16
      * w3t: [round_up(output_dim, 8), 128] bf16 (PyTorch (out, in) layout; padded rows zero)
      * b3t: [round_up(output_dim, 8), 1] f32
    """
    keys = jax.random.split(key, 6)

    def uniform(k, shape, fan_in):
        bound = 1.0 / float(fan_in) ** 0.5
        return jax.random.uniform(k, shape, jnp.float32, -bound, bound)

    d_in_pad = _round_up(input_dim, SUBLANE)
    out_pad8 = _round_up(output_dim, SUBLANE)

    w1 = uniform(keys[0], (input_dim, HIDDEN), input_dim)
    b1 = uniform(keys[1], (1, HIDDEN), input_dim)
    w2 = uniform(keys[2], (HIDDEN, HIDDEN), HIDDEN)
    b2 = uniform(keys[3], (1, HIDDEN), HIDDEN)
    w3t = uniform(keys[4], (output_dim, HIDDEN), HIDDEN)
    b3t = uniform(keys[5], (output_dim, 1), HIDDEN)

    w1 = jnp.pad(w1, ((0, d_in_pad - input_dim), (0, 0))).astype(jnp.bfloat16)
    w2 = w2.astype(jnp.bfloat16)
    w3t = jnp.pad(w3t, ((0, out_pad8 - output_dim), (0, 0))).astype(jnp.bfloat16)
    b3t = jnp.pad(b3t, ((0, out_pad8 - output_dim), (0, 0)))
    return w1, b1, w2, b2, w3t, b3t


if __name__ == "__main__":
    key = jax.random.PRNGKey(0)
    k_x, k_p = jax.random.split(key)

    batch = 8
    input_dim = 16    # state dimension
    output_dim = 8    # number of actions

    x = jax.random.normal(k_x, (batch, input_dim), dtype=jnp.float32)
    params = init_dqn_params(k_p, input_dim, output_dim)

    out = dqn_forward(x, *params, out_dim=output_dim)
    jax.block_until_ready(out)

    # Plain-JAX reference using the same bf16-rounded weights.
    w1, b1, w2, b2, w3t, b3t = params
    w1f = w1.astype(jnp.float32)[:input_dim]
    w2f = w2.astype(jnp.float32)
    w3f = w3t.astype(jnp.float32)[:output_dim].T          # (HIDDEN, out)
    b3f = b3t[:output_dim, 0]

    xr = x.astype(jnp.bfloat16).astype(jnp.float32)
    h = jnp.maximum(xr @ w1f + b1, 0.0)
    h = jnp.maximum(h.astype(jnp.bfloat16).astype(jnp.float32) @ w2f + b2, 0.0)
    ref = h.astype(jnp.bfloat16).astype(jnp.float32) @ w3f + b3f

    assert out.shape == (batch, output_dim)
    assert jnp.allclose(out, ref, atol=2e-3, rtol=2e-3), float(jnp.max(jnp.abs(out - ref)))

    print("KERNEL_OK")
</pallas_src>

<mosaic_0001>
module attributes {stable_mosaic.version = 11 : i64} {
  func.func @_dqn_kernel(%arg0: i32, %arg1: memref<8x16xf32, #tpu.memory_space<vmem>>, %arg2: memref<16x128xbf16, #tpu.memory_space<vmem>>, %arg3: memref<1x128xf32, #tpu.memory_space<vmem>>, %arg4: memref<128x128xbf16, #tpu.memory_space<vmem>>, %arg5: memref<1x128xf32, #tpu.memory_space<vmem>>, %arg6: memref<8x128xbf16, #tpu.memory_space<vmem>>, %arg7: memref<8x1xf32, #tpu.memory_space<vmem>>, %arg8: memref<8x8xf32, #tpu.memory_space<vmem>>) attributes {dimension_semantics = [#tpu.dimension_semantics<parallel>], iteration_bounds = array<i64: 1>, scalar_prefetch = 0 : i64, scratch_operands = 0 : i64, tpu.core_type = #tpu.core_type<tc>, window_params = [{transform_indices = @transform_0, window_bounds = array<i64: 8, 16>}, {pipeline_mode = #tpu.pipeline_mode<synchronous>, transform_indices = @transform_1, window_bounds = array<i64: 16, 128>}, {pipeline_mode = #tpu.pipeline_mode<synchronous>, transform_indices = @transform_2, window_bounds = array<i64: 1, 128>}, {pipeline_mode = #tpu.pipeline_mode<synchronous>, transform_indices = @transform_3, window_bounds = array<i64: 128, 128>}, {pipeline_mode = #tpu.pipeline_mode<synchronous>, transform_indices = @transform_4, window_bounds = array<i64: 1, 128>}, {pipeline_mode = #tpu.pipeline_mode<synchronous>, transform_indices = @transform_5, window_bounds = array<i64: 8, 128>}, {pipeline_mode = #tpu.pipeline_mode<synchronous>, transform_indices = @transform_6, window_bounds = array<i64: 8, 1>}, {transform_indices = @transform_7, window_bounds = array<i64: 8, 8>}]} {
    %c0 = arith.constant 0 : index
    %c0_0 = arith.constant 0 : index
    %0 = vector.load %arg1[%c0, %c0_0] : memref<8x16xf32, #tpu.memory_space<vmem>>, vector<8x16xf32>
    %1 = arith.truncf %0 : vector<8x16xf32> to vector<8x16xbf16>
    %c0_1 = arith.constant 0 : index
    %c0_2 = arith.constant 0 : index
    %2 = vector.load %arg2[%c0_1, %c0_2] : memref<16x128xbf16, #tpu.memory_space<vmem>>, vector<16x128xbf16>
    %cst = arith.constant dense<0.000000e+00> : vector<8x128xf32>
    %3 = tpu.matmul %1, %2, %cst {dimension_numbers = #tpu.dot_dimension_numbers<[1], [0], [0], [1], [0, 0, 1, 1], [], []>} : vector<8x16xbf16>, vector<16x128xbf16>, vector<8x128xf32> -> vector<8x128xf32>
    %c0_3 = arith.constant 0 : index
    %c0_4 = arith.constant 0 : index
    %4 = vector.load %arg3[%c0_3, %c0_4] : memref<1x128xf32, #tpu.memory_space<vmem>>, vector<1x128xf32>
    %5 = vector.broadcast %4 : vector<1x128xf32> to vector<8x128xf32>
    %6 = arith.addf %3, %5 : vector<8x128xf32>
    %cst_5 = arith.constant 0.000000e+00 : f32
    %7 = vector.broadcast %cst_5 : f32 to vector<8x128xf32>
    %8 = arith.maximumf %6, %7 : vector<8x128xf32>
    %9 = arith.truncf %8 : vector<8x128xf32> to vector<8x128xbf16>
    %c0_6 = arith.constant 0 : index
    %c0_7 = arith.constant 0 : index
    %10 = vector.load %arg4[%c0_6, %c0_7] : memref<128x128xbf16, #tpu.memory_space<vmem>>, vector<128x128xbf16>
    %cst_8 = arith.constant dense<0.000000e+00> : vector<8x128xf32>
    %11 = tpu.matmul %9, %10, %cst_8 {dimension_numbers = #tpu.dot_dimension_numbers<[1], [0], [0], [1], [0, 0, 1, 1], [], []>} : vector<8x128xbf16>, vector<128x128xbf16>, vector<8x128xf32> -> vector<8x128xf32>
    %c0_9 = arith.constant 0 : index
    %c0_10 = arith.constant 0 : index
    %12 = vector.load %arg5[%c0_9, %c0_10] : memref<1x128xf32, #tpu.memory_space<vmem>>, vector<1x128xf32>
    %13 = vector.broadcast %12 : vector<1x128xf32> to vector<8x128xf32>
    %14 = arith.addf %11, %13 : vector<8x128xf32>
    %cst_11 = arith.constant 0.000000e+00 : f32
    %15 = vector.broadcast %cst_11 : f32 to vector<8x128xf32>
    %16 = arith.maximumf %14, %15 : vector<8x128xf32>
    %17 = arith.truncf %16 : vector<8x128xf32> to vector<8x128xbf16>
    %c0_12 = arith.constant 0 : index
    %c0_13 = arith.constant 0 : index
    %18 = vector.load %arg6[%c0_12, %c0_13] : memref<8x128xbf16, #tpu.memory_space<vmem>>, vector<8x128xbf16>
    %cst_14 = arith.constant dense<0.000000e+00> : vector<8x8xf32>
    %19 = tpu.matmul %18, %17, %cst_14 {dimension_numbers = #tpu.dot_dimension_numbers<[1], [1], [0], [0], [0, 0, 1, 0], [], []>} : vector<8x128xbf16>, vector<8x128xbf16>, vector<8x8xf32> -> vector<8x8xf32>
    %c0_15 = arith.constant 0 : index
    %c0_16 = arith.constant 0 : index
    %20 = vector.load %arg7[%c0_15, %c0_16] : memref<8x1xf32, #tpu.memory_space<vmem>>, vector<8x1xf32>
    %21 = vector.broadcast %20 : vector<8x1xf32> to vector<8x8xf32>
    %22 = arith.addf %19, %21 : vector<8x8xf32>
    %c0_17 = arith.constant 0 : index
    %c0_18 = arith.constant 0 : index
    %23 = vector.load %arg8[%c0_17, %c0_18] : memref<8x8xf32, #tpu.memory_space<vmem>>, vector<8x8xf32>
    tpu.vector_store %arg8[%c0_17, %c0_18], %22 {strides = array<i32>} : memref<8x8xf32, #tpu.memory_space<vmem>>, vector<8x8xf32>,
    return
  }
  func.func @transform_0(%arg0: i32) -> (i32, i32) {
    %c0_i32 = arith.constant 0 : i32
    %c0_i32_0 = arith.constant 0 : i32
    return %arg0, %c0_i32 : i32, i32
  }
  func.func @transform_1(%arg0: i32) -> (i32, i32) {
    %c0_i32 = arith.constant 0 : i32
    %c0_i32_0 = arith.constant 0 : i32
    %c0_i32_1 = arith.constant 0 : i32
    return %c0_i32, %c0_i32_0 : i32, i32
  }
  func.func @transform_2(%arg0: i32) -> (i32, i32) {
    %c0_i32 = arith.constant 0 : i32
    %c0_i32_0 = arith.constant 0 : i32
    %c0_i32_1 = arith.constant 0 : i32
    return %c0_i32, %c0_i32_0 : i32, i32
  }
  func.func @transform_3(%arg0: i32) -> (i32, i32) {
    %c0_i32 = arith.constant 0 : i32
    %c0_i32_0 = arith.constant 0 : i32
    %c0_i32_1 = arith.constant 0 : i32
    return %c0_i32, %c0_i32_0 : i32, i32
  }
  func.func @transform_4(%arg0: i32) -> (i32, i32) {
    %c0_i32 = arith.constant 0 : i32
    %c0_i32_0 = arith.constant 0 : i32
    %c0_i32_1 = arith.constant 0 : i32
    return %c0_i32, %c0_i32_0 : i32, i32
  }
  func.func @transform_5(%arg0: i32) -> (i32, i32) {
    %c0_i32 = arith.constant 0 : i32
    %c0_i32_0 = arith.constant 0 : i32
    %c0_i32_1 = arith.constant 0 : i32
    return %c0_i32, %c0_i32_0 : i32, i32
  }
  func.func @transform_6(%arg0: i32) -> (i32, i32) {
    %c0_i32 = arith.constant 0 : i32
    %c0_i32_0 = arith.constant 0 : i32
    %c0_i32_1 = arith.constant 0 : i32
    return %c0_i32, %c0_i32_0 : i32, i32
  }
  func.func @transform_7(%arg0: i32) -> (i32, i32) {
    %c0_i32 = arith.constant 0 : i32
    %c0_i32_0 = arith.constant 0 : i32
    return %c0_i32, %arg0 : i32, i32
  }
}

</mosaic_0001>

<llo_original>
// kernel: dqn_forward.1
$region0: #{dqn_forward.1}
  #allocation0 [shape = 'u32[]', space=smem, size = 0x4, offset = 0x4, fixed_abs, tag = 'smem constant byte address 0x4 - core index']
  #allocation1 [shape = 'u32[72,128]{1,0:T(1,128)}', space=vmem, size = 0x9000, scoped, tag = 'internal scratch']
  %s0 = inlined_call_operand.vmem [shape: f32[8,16], index: 0, kind: input, shape index: {}]
  %s1 = inlined_call_operand.hbm [shape: bf16[16,128], index: 1, kind: input, shape index: {}]
  %s2 = inlined_call_operand.vmem [shape: f32[1,128], index: 2, kind: input, shape index: {}]
  %s3 = inlined_call_operand.hbm [shape: bf16[128,128], index: 3, kind: input, shape index: {}]
  %s4 = inlined_call_operand.vmem [shape: f32[1,128], index: 4, kind: input, shape index: {}]
  %s5 = inlined_call_operand.hbm [shape: bf16[8,128], index: 5, kind: input, shape index: {}]
  %s6 = inlined_call_operand.vmem [shape: f32[8,1], index: 6, kind: input, shape index: {}]
  %s7 = inlined_call_operand.vmem [shape: f32[8,8], index: 7, kind: output, shape index: {}]
  %s8 = sld [smem:[#allocation0]]
  $region50: #{dqn_forward.1} parent=0
    _
  %s10 = ssub.s32 1, %s8
  %s11 = scalar_select 0, %s10, %s8
  $region1: #{dqn_forward.1} parent=0
    #allocation2 [shape = 'u8[4096]{0}', space=vmem, size = 0x1000, scoped, tag = 'input window, operand 1, single buffered']
    #allocation3 [shape = 's32[1]{0}', space=sflag, size = 0x4, scoped, tag = 'scoped memory for dqn_forward.1']
    #allocation4 [shape = 'u8[32768]{0}', space=vmem, size = 0x8000, scoped, tag = 'input window, operand 3, single buffered']
    #allocation5 [shape = 's32[1]{0}', space=sflag, size = 0x4, scoped, tag = 'scoped memory for dqn_forward.1']
    #allocation6 [shape = 'u8[2048]{0}', space=vmem, size = 0x800, scoped, tag = 'input window, operand 5, single buffered']
    %12 = vsyncpa [#allocation3], 0
    %13 = vsyncpa [#allocation5], 0
    // Predicated region
    $region2: #{dqn_forward.1} parent=1 // pred_check
      _
    $region3: #{dqn_forward.1} parent=1 // pred_check_branch
      %15 = sbr.rel (0) target = $region5
    $region4: #{dqn_forward.1} parent=1 // pred_region
      _
    $region5: #{dqn_forward.1} parent=1 // pred_fallthru
      _
    // Predicated region
    $region6: #{dqn_forward.1} parent=1 // pred_check
      _
    $region7: #{dqn_forward.1} parent=1 // pred_check_branch
      %17 = sbr.rel (0) target = $region9
    $region8: #{dqn_forward.1} parent=1 // pred_region
      %19 = vsyncadd [#allocation3], 0
      %s20 = sshll.u32 %s1, 4
      %s21 = int_to_ptr.hbm [resolvable:$true] %s20
      %s22 = sshll.u32 [#allocation2], 4
      %s23 = int_to_ptr.vmem [resolvable:$true] %s22
      %28 = dma.hbm_to_vmem [thread:$0]  %s21, 128, %s23, [#allocation3], 64, 64, 4
    $region9: #{dqn_forward.1} parent=1 // pred_fallthru
      _
    // Predicated region
    $region10: #{dqn_forward.1} parent=1 // pred_check
      _
    $region11: #{dqn_forward.1} parent=1 // pred_check_branch
      %30 = sbr.rel (0) target = $region13
    $region12: #{dqn_forward.1} parent=1 // pred_region
      _
    $region13: #{dqn_forward.1} parent=1 // pred_fallthru
      _
    // Predicated region
    $region14: #{dqn_forward.1} parent=1 // pred_check
      _
    $region15: #{dqn_forward.1} parent=1 // pred_check_branch
      %32 = sbr.rel (0) target = $region17
    $region16: #{dqn_forward.1} parent=1 // pred_region
      %34 = vsyncadd [#allocation5], 0
      %s35 = sshll.u32 %s3, 4
      %s36 = int_to_ptr.hbm [resolvable:$true] %s35
      %s37 = sshll.u32 [#allocation4], 4
      %s38 = int_to_ptr.vmem [resolvable:$true] %s37
      %43 = dma.hbm_to_vmem [thread:$0]  %s36, 1024, %s38, [#allocation5], 64, 64, 4
    $region17: #{dqn_forward.1} parent=1 // pred_fallthru
      _
    // Predicated region
    $region18: #{dqn_forward.1} parent=1 // pred_check
      _
    $region19: #{dqn_forward.1} parent=1 // pred_check_branch
      %45 = sbr.rel (0) target = $region21
    $region20: #{dqn_forward.1} parent=1 // pred_region
      _
    $region21: #{dqn_forward.1} parent=1 // pred_fallthru
      _
    // Predicated region
    $region22: #{dqn_forward.1} parent=1 // pred_check
      _
    $region23: #{dqn_forward.1} parent=1 // pred_check_branch
      %47 = sbr.rel (0) target = $region25
    $region24: #{dqn_forward.1} parent=1 // pred_region
      %49 = vsyncadd [#allocation5], 0
      %s51 = sshll.u32 %s5, 4
      %s52 = int_to_ptr.hbm [resolvable:$true] %s51
      %s53 = sshll.u32 [#allocation6], 4
      %s54 = int_to_ptr.vmem [resolvable:$true] %s53
      %56 = dma.hbm_to_vmem [thread:$0]  %s52, 64, %s54, [#allocation5]
    $region25: #{dqn_forward.1} parent=1 // pred_fallthru
      _
    // Predicated region
    $region26: #{dqn_forward.1} parent=1 // pred_check
      _
    $region27: #{dqn_forward.1} parent=1 // pred_check_branch
      %58 = sbr.rel (0) target = $region29
    $region28: #{dqn_forward.1} parent=1 // pred_region
      _
    $region29: #{dqn_forward.1} parent=1 // pred_fallthru
      _
    // Predicated region
    $region30: #{dqn_forward.1} parent=1 // pred_check
      _
    $region31: #{dqn_forward.1} parent=1 // pred_check_branch
      %60 = sbr.rel (0) target = $region33
    $region32: #{dqn_forward.1} parent=1 // pred_region
      %62 = dma.done [#allocation3], 128
    $region33: #{dqn_forward.1} parent=1 // pred_fallthru
      _
    // Predicated region
    $region34: #{dqn_forward.1} parent=1 // pred_check
      _
    $region35: #{dqn_forward.1} parent=1 // pred_check_branch
      %64 = sbr.rel (0) target = $region37
    $region36: #{dqn_forward.1} parent=1 // pred_region
      %66 = dma.done [#allocation5], 1024
    $region37: #{dqn_forward.1} parent=1 // pred_fallthru
      _
    // Predicated region
    $region38: #{dqn_forward.1} parent=1 // pred_check
      _
    $region39: #{dqn_forward.1} parent=1 // pred_check_branch
      %68 = sbr.rel (0) target = $region41
    $region40: #{dqn_forward.1} parent=1 // pred_region
      %70 = dma.done [#allocation5], 64
    $region41: #{dqn_forward.1} parent=1 // pred_fallthru
      _
    %v72 = vld [vmem:[%s0] sm:$0xff]
    %v73 = vpack.c.bf16 %v72, %v72
    %v74 = vld [vmem:[#allocation2] sm:$0xf]
    %v75 = vld [vmem:[#allocation2 + $0x4] sm:$0xf]
    %v76 = vld [vmem:[%s2] sm:$0x1]
    %v78 = vperm.slane %v76, 0
    %v82 = vunpack.c.l.b16 %v74
    %v83 = vunpack.c.l.b16 %v75
    %v84 = vpack.c.b16 %v83, %v82
    %vm86 = vcmask 130048
    %v88 = vsel %vm86, %v73, 0
    %90 = vmatpush.bf16.msra.mxu0 0
    %91 = vmatpush.bf16.msra.mxu0 0
    %92 = vmatpush.bf16.msra.mxu0 0
    %93 = vmatpush.bf16.msra.mxu0 0
    %94 = vmatpush.bf16.msra.mxu0 0
    %95 = vmatpush.bf16.msra.mxu0 0
    %96 = vmatpush.bf16.msra.mxu0 0
    %97 = vmatpush.bf16.msra.mxu0 %v84
    %98 = vmatmul.bf16.gmra.mxu0 %v88
    %v99 = vpop.f32.mrf.mxu0
    %v100 = vadd.f32 %v78, %v99
    %v101 = vpop.f32.mrf.mxu0
    %102 = vdwg.mxu0
    %v103 = vmax.f32 %v100, 0.0
    %v104 = vpack.c.bf16 %v103, %v103
    %v105 = vld [vmem:[#allocation4] sm:$0xf]
    %v106 = vld [vmem:[#allocation4 + $0x4] sm:$0xf]
    %v107 = vld [vmem:[#allocation4 + $0x8] sm:$0xf]
    %v108 = vld [vmem:[#allocation4 + $0xc] sm:$0xf]
    %v109 = vld [vmem:[#allocation4 + $0x10] sm:$0xf]
    %v110 = vld [vmem:[#allocation4 + $0x14] sm:$0xf]
    %v111 = vld [vmem:[#allocation4 + $0x18] sm:$0xf]
    %v112 = vld [vmem:[#allocation4 + $0x1c] sm:$0xf]
    %v113 = vld [vmem:[#allocation4 + $0x20] sm:$0xf]
    %v114 = vld [vmem:[#allocation4 + $0x24] sm:$0xf]
    %v115 = vld [vmem:[#allocation4 + $0x28] sm:$0xf]
    %v116 = vld [vmem:[#allocation4 + $0x2c] sm:$0xf]
    %v117 = vld [vmem:[#allocation4 + $0x30] sm:$0xf]
    %v118 = vld [vmem:[#allocation4 + $0x34] sm:$0xf]
    %v119 = vld [vmem:[#allocation4 + $0x38] sm:$0xf]
    %v120 = vld [vmem:[#allocation4 + $0x3c] sm:$0xf]
    %v121 = vld [vmem:[%s4] sm:$0x1]
    %v123 = vperm.slane %v121, 0
    %v141 = vunpack.c.l.b16 %v105
    %v142 = vunpack.c.l.b16 %v106
    %v143 = vunpack.c.l.b16 %v107
    %v144 = vunpack.c.l.b16 %v108
    %v145 = vunpack.c.l.b16 %v109
    %v146 = vunpack.c.l.b16 %v110
    %v147 = vunpack.c.l.b16 %v111
    %v148 = vunpack.c.l.b16 %v112
    %v149 = vunpack.c.l.b16 %v113
    %v150 = vunpack.c.l.b16 %v114
    %v151 = vunpack.c.l.b16 %v115
    %v152 = vunpack.c.l.b16 %v116
    %v153 = vunpack.c.l.b16 %v117
    %v154 = vunpack.c.l.b16 %v118
    %v155 = vunpack.c.l.b16 %v119
    %v156 = vunpack.c.l.b16 %v120
    %v157 = vpack.c.b16 %v142, %v141
    %v158 = vpack.c.b16 %v144, %v143
    %v159 = vpack.c.b16 %v146, %v145
    %v160 = vpack.c.b16 %v148, %v147
    %v161 = vpack.c.b16 %v150, %v149
    %v162 = vpack.c.b16 %v152, %v151
    %v163 = vpack.c.b16 %v154, %v153
    %v164 = vpack.c.b16 %v156, %v155
    %173 = vmatpush.bf16.msra.mxu0 %v164
    %174 = vmatpush.bf16.msra.mxu0 %v163
    %175 = vmatpush.bf16.msra.mxu0 %v162
    %176 = vmatpush.bf16.msra.mxu0 %v161
    %177 = vmatpush.bf16.msra.mxu0 %v160
    %178 = vmatpush.bf16.msra.mxu0 %v159
    %179 = vmatpush.bf16.msra.mxu0 %v158
    %180 = vmatpush.bf16.msra.mxu0 %v157
    %181 = vmatmul.bf16.gmra.mxu0 %v104
    %v182 = vpop.f32.mrf.mxu0
    %v183 = vadd.f32 %v123, %v182
    %v184 = vpop.f32.mrf.mxu0
    %185 = vdwg.mxu0
    %v186 = vmax.f32 %v183, 0.0
    %v187 = vpack.c.bf16 %v186, %v186
    %v188 = vld [vmem:[#allocation6] sm:$0xf]
    %v189 = vld [vmem:[%s6] sm:$0xff]
    %191 = vset.pattern.permute.xlu0 0
    %192 = vperm.xlu0 %191, %v189
    %v193 = vpop.permute.xlu0 %192
    %195 = vmatpush.bf16.xpose.msra.mxu0 0
    %196 = vmatpush.bf16.xpose.msra.mxu0 0
    %197 = vmatpush.bf16.xpose.msra.mxu0 0
    %198 = vmatpush.bf16.xpose.msra.mxu0 0
    %199 = vmatpush.bf16.xpose.msra.mxu0 0
    %200 = vmatpush.bf16.xpose.msra.mxu0 0
    %201 = vmatpush.bf16.xpose.msra.mxu0 0
    %202 = vmatpush.bf16.xpose.msra.mxu0 %v187
    %203 = vmatmul.bf16.gmra.mxu0 %v188
    %v204 = vpop.f32.mrf.mxu0
    %v205 = vadd.f32 %v193, %v204
    %v206 = vpop.f32.mrf.mxu0
    %207 = vdwg.mxu0
    %vm208 = vcmask 64512
    %209 = vst.msk [vmem:[%s7] sm:$0xff] %vm208, %v205
    // Predicated region
    $region42: #{dqn_forward.1} parent=1 // pred_check
      _
    $region43: #{dqn_forward.1} parent=1 // pred_check_branch
      %211 = sbr.rel (0) target = $region45
    $region44: #{dqn_forward.1} parent=1 // pred_region
      _
    $region45: #{dqn_forward.1} parent=1 // pred_fallthru
      _
    // Predicated region
    $region46: #{dqn_forward.1} parent=1 // pred_check
      _
    $region47: #{dqn_forward.1} parent=1 // pred_check_branch
      %213 = sbr.rel (0) target = $region49
    $region48: #{dqn_forward.1} parent=1 // pred_region
      _
    $region49: #{dqn_forward.1} parent=1 // pred_fallthru
      _
    %214 = vsyncpa [#allocation3], 1
    %215 = vsyncpa [#allocation5], 1

</llo_original>
